<compile_context>
chip_gen: v7x
topology: tpu7x:2x2x1
jax: 0.10.0
libtpu: 0.0.40
codegen_flags: <defaults>
</compile_context>

<pallas_src>
import functools
import math

import jax
import jax.numpy as jnp
from jax.experimental import pallas as pl
from jax.experimental.pallas import tpu as pltpu

_LANE = 128


def _encoder_kernel(x_ref, w_ref, b_ref, o_ref):
    # y = relu(x @ W + b), accumulated in f32 on the MXU.
    h = jnp.dot(x_ref[...], w_ref[...], preferred_element_type=jnp.float32)
    h = h + b_ref[...]
    o_ref[...] = jnp.maximum(h, 0.0).astype(o_ref.dtype)


def _round_up(n, m):
    return ((n + m - 1) // m) * m


def _fold_factor(in_dim, out_dim):
    """Smallest s such that s*in_dim and s*out_dim are multiples of 128."""
    s_in = _LANE // math.gcd(in_dim, _LANE)
    s_out = _LANE // math.gcd(out_dim, _LANE)
    s = s_in * s_out // math.gcd(s_in, s_out)
    # Fall back to the unfolded layout if folding would blow up the weight.
    if s > _LANE or s * s * in_dim * out_dim * 4 > (8 << 20):
        return 1
    return s


@functools.partial(jax.jit, static_argnames=("block_rows", "compute_dtype"))
def encoder_forward(x, w, b, *, block_rows=2048, compute_dtype=jnp.float32):
    """EncoderModel.forward (Linear + ReLU) as one Pallas call.

    Args:
      x: [B, input_dim] float32
      w: [input_dim, output_dim] float32 (transposed PyTorch weight)
      b: [output_dim] or [1, output_dim] float32
      block_rows: max batch-tile height in *original* rows (multiple of 8).
      compute_dtype: dtype of x/W fed to the MXU (f32 or bf16); accumulation
        and the result stay float32.
    Returns:
      [B, output_dim] float32
    """
    B, in_dim = x.shape
    out_dim = w.shape[1]
    b = b.reshape(1, out_dim)

    s = _fold_factor(in_dim, out_dim)
    in_f, out_f = s * in_dim, s * out_dim

    # Pad batch only to a multiple of the fold factor (<= s-1 extra rows).
    b_pad = _round_up(max(B, 1), s)
    x_p = x if b_pad == B else jnp.pad(x, ((0, b_pad - B), (0, 0)))

    # Fold: contiguous row-major reshapes (free) + block-diag weight expansion.
    bf = b_pad // s
    x_f = x_p.reshape(bf, in_f).astype(compute_dtype)
    w_f = (w if s == 1 else jnp.kron(jnp.eye(s, dtype=w.dtype), w)).astype(compute_dtype)
    b_f = jnp.tile(b, (1, s)).astype(jnp.float32)

    # Folded batch tile: large to amortize per-step overhead, capped so the
    # grid has >= 2 steps when there is enough work (v7x shards the parallel
    # axis across its 2 TensorCores).
    max_tile = max(8, block_rows // s)
    half = _round_up(pl.cdiv(bf, 2), 8)
    tbf = min(max_tile, half)
    if tbf >= bf:
        tbf = bf  # single block covering the whole (possibly <8-row) array
    grid = (pl.cdiv(bf, tbf),)

    itemsize = jnp.dtype(compute_dtype).itemsize
    cost = pl.CostEstimate(
        flops=2 * bf * in_f * out_f,
        transcendentals=0,
        bytes_accessed=(bf * in_f * itemsize + in_f * out_f * itemsize
                        + out_f * 4 + bf * out_f * 4),
    )

    out = pl.pallas_call(
        _encoder_kernel,
        out_shape=jax.ShapeDtypeStruct((bf, out_f), jnp.float32),
        grid=grid,
        in_specs=[
            pl.BlockSpec((tbf, in_f), lambda i: (i, 0)),     # activations (lane-dense)
            pl.BlockSpec((in_f, out_f), lambda i: (0, 0)),   # weight: grid-invariant
            pl.BlockSpec((1, out_f), lambda i: (0, 0)),      # bias:   grid-invariant
        ],
        out_specs=pl.BlockSpec((tbf, out_f), lambda i: (i, 0)),
        compiler_params=pltpu.CompilerParams(
            dimension_semantics=("parallel",)),
        cost_estimate=cost,
    )(x_f, w_f, b_f)

    out = out.reshape(b_pad, out_dim)  # contiguous relabel (free)
    return out if b_pad == B else out[:B]


def init_params(key, input_dim, output_dim):
    """PyTorch nn.Linear default init: U(-1/sqrt(fan_in), 1/sqrt(fan_in))."""
    kw, kb = jax.random.split(key)
    bound = 1.0 / jnp.sqrt(input_dim)
    w = jax.random.uniform(kw, (input_dim, output_dim), jnp.float32, -bound, bound)
    b = jax.random.uniform(kb, (1, output_dim), jnp.float32, -bound, bound)
    return w, b


def _reference_forward(x, w, b):
    return jnp.maximum(x @ w + b, 0.0)


if __name__ == "__main__":
    input_dim, output_dim = 16, 32
    batch = 4

    key = jax.random.PRNGKey(0)
    k_params, k_x = jax.random.split(key)

    w, b = init_params(k_params, input_dim, output_dim)
    x = jax.random.normal(k_x, (batch, input_dim), jnp.float32)

    # Small-batch (folds to a single row-slab) correctness check.
    h = encoder_forward(x, w, b)
    jax.block_until_ready(h)
    assert h.shape == (batch, output_dim)
    assert jnp.allclose(h, _reference_forward(x, w, b), atol=1e-5, rtol=1e-5)

    # Larger, non-tile-aligned batch: exercises multi-step grid + masked
    # partial last block.
    x2 = jax.random.normal(jax.random.PRNGKey(1), (300, input_dim), jnp.float32)
    h2 = encoder_forward(x2, w, b)
    jax.block_until_ready(h2)
    assert h2.shape == (300, output_dim)
    assert jnp.allclose(h2, _reference_forward(x2, w, b), atol=1e-5, rtol=1e-5)

    # bf16 operand path (v6e/v7x bandwidth win); f32 MXU accumulation.
    h3 = encoder_forward(x2, w, b, compute_dtype=jnp.bfloat16)
    jax.block_until_ready(h3)
    assert jnp.allclose(h3, _reference_forward(x2, w, b), atol=5e-2, rtol=5e-2)

    print("KERNEL_OK")
</pallas_src>

<mosaic_0001>
module attributes {stable_mosaic.version = 11 : i64} {
  func.func @_encoder_kernel(%arg0: i32, %arg1: memref<1x128xf32, #tpu.memory_space<vmem>>, %arg2: memref<128x256xf32, #tpu.memory_space<vmem>>, %arg3: memref<1x256xf32, #tpu.memory_space<vmem>>, %arg4: memref<1x256xf32, #tpu.memory_space<vmem>>) attributes {dimension_semantics = [#tpu.dimension_semantics<parallel>], iteration_bounds = array<i64: 1>, scalar_prefetch = 0 : i64, scratch_operands = 0 : i64, tpu.core_type = #tpu.core_type<tc>, window_params = [{transform_indices = @transform_0, window_bounds = array<i64: 1, 128>}, {pipeline_mode = #tpu.pipeline_mode<synchronous>, transform_indices = @transform_1, window_bounds = array<i64: 128, 256>}, {pipeline_mode = #tpu.pipeline_mode<synchronous>, transform_indices = @transform_2, window_bounds = array<i64: 1, 256>}, {transform_indices = @transform_3, window_bounds = array<i64: 1, 256>}]} {
    %c0 = arith.constant 0 : index
    %c0_0 = arith.constant 0 : index
    %0 = vector.load %arg1[%c0, %c0_0] : memref<1x128xf32, #tpu.memory_space<vmem>>, vector<1x128xf32>
    %c0_1 = arith.constant 0 : index
    %c0_2 = arith.constant 0 : index
    %1 = vector.load %arg2[%c0_1, %c0_2] : memref<128x256xf32, #tpu.memory_space<vmem>>, vector<128x256xf32>
    %cst = arith.constant dense<0.000000e+00> : vector<1x256xf32>
    %2 = tpu.matmul %0, %1, %cst {dimension_numbers = #tpu.dot_dimension_numbers<[1], [0], [0], [1], [0, 0, 1, 1], [], []>} : vector<1x128xf32>, vector<128x256xf32>, vector<1x256xf32> -> vector<1x256xf32>
    %c0_3 = arith.constant 0 : index
    %c0_4 = arith.constant 0 : index
    %3 = vector.load %arg3[%c0_3, %c0_4] : memref<1x256xf32, #tpu.memory_space<vmem>>, vector<1x256xf32>
    %4 = arith.addf %2, %3 : vector<1x256xf32>
    %cst_5 = arith.constant 0.000000e+00 : f32
    %5 = vector.broadcast %cst_5 : f32 to vector<1x256xf32>
    %6 = arith.maximumf %4, %5 : vector<1x256xf32>
    %c0_6 = arith.constant 0 : index
    %c0_7 = arith.constant 0 : index
    %7 = vector.load %arg4[%c0_6, %c0_7] : memref<1x256xf32, #tpu.memory_space<vmem>>, vector<1x256xf32>
    tpu.vector_store %arg4[%c0_6, %c0_7], %6 {strides = array<i32>} : memref<1x256xf32, #tpu.memory_space<vmem>>, vector<1x256xf32>,
    return
  }
  func.func @transform_0(%arg0: i32) -> (i32, i32) {
    %c0_i32 = arith.constant 0 : i32
    %c0_i32_0 = arith.constant 0 : i32
    return %arg0, %c0_i32 : i32, i32
  }
  func.func @transform_1(%arg0: i32) -> (i32, i32) {
    %c0_i32 = arith.constant 0 : i32
    %c0_i32_0 = arith.constant 0 : i32
    %c0_i32_1 = arith.constant 0 : i32
    return %c0_i32, %c0_i32_0 : i32, i32
  }
  func.func @transform_2(%arg0: i32) -> (i32, i32) {
    %c0_i32 = arith.constant 0 : i32
    %c0_i32_0 = arith.constant 0 : i32
    %c0_i32_1 = arith.constant 0 : i32
    return %c0_i32, %c0_i32_0 : i32, i32
  }
  func.func @transform_3(%arg0: i32) -> (i32, i32) {
    %c0_i32 = arith.constant 0 : i32
    %c0_i32_0 = arith.constant 0 : i32
    return %arg0, %c0_i32 : i32, i32
  }
}

</mosaic_0001>

<llo_original>
// kernel: encoder_forward.1
$region0: #{encoder_forward.1}
  #allocation0 [shape = 'u32[]', space=smem, size = 0x4, offset = 0x4, fixed_abs, tag = 'smem constant byte address 0x4 - core index']
  #allocation1 [shape = 'u32[144,128]{1,0:T(1,128)}', space=vmem, size = 0x12000, scoped, tag = 'internal scratch']
  %s0 = inlined_call_operand.vmem [shape: f32[1,128], index: 0, kind: input, shape index: {}]
  %s1 = inlined_call_operand.vmem [shape: f32[128,256], index: 1, kind: input, shape index: {}]
  %s2 = inlined_call_operand.vmem [shape: f32[1,256], index: 2, kind: input, shape index: {}]
  %s3 = inlined_call_operand.vmem [shape: f32[1,256], index: 3, kind: output, shape index: {}]
  %s4 = sld [smem:[#allocation0]]
  $region22: #{encoder_forward.1} parent=0
    _
  %s6 = ssub.s32 1, %s4
  %s7 = scalar_select 0, %s6, %s4
  // Predicated region
  $region2: #{encoder_forward.1} parent=0 // pred_check
    _
  $region3: #{encoder_forward.1} parent=0 // pred_check_branch
    %9 = sbr.rel (0) target = $region5
  $region4: #{encoder_forward.1} parent=0 // pred_region
    _
  $region5: #{encoder_forward.1} parent=0 // pred_fallthru
    _
  // Predicated region
  $region6: #{encoder_forward.1} parent=0 // pred_check
    _
  $region7: #{encoder_forward.1} parent=0 // pred_check_branch
    %11 = sbr.rel (0) target = $region9
  $region8: #{encoder_forward.1} parent=0 // pred_region
    _
  $region9: #{encoder_forward.1} parent=0 // pred_fallthru
    _
  // Predicated region
  $region10: #{encoder_forward.1} parent=0 // pred_check
    _
  $region11: #{encoder_forward.1} parent=0 // pred_check_branch
    %13 = sbr.rel (0) target = $region13
  $region12: #{encoder_forward.1} parent=0 // pred_region
    _
  $region13: #{encoder_forward.1} parent=0 // pred_fallthru
    _
  %v14 = vld [vmem:[%s0] sm:$0x1]
  %v15 = vld [vmem:[%s1] sm:$0xff]
  %v16 = vld [vmem:[%s1 + $0x8] sm:$0xff]
  %v17 = vld [vmem:[%s1 + $0x10] sm:$0xff]
  %v18 = vld [vmem:[%s1 + $0x18] sm:$0xff]
  %v19 = vld [vmem:[%s1 + $0x20] sm:$0xff]
  %v20 = vld [vmem:[%s1 + $0x28] sm:$0xff]
  %v21 = vld [vmem:[%s1 + $0x30] sm:$0xff]
  %v22 = vld [vmem:[%s1 + $0x38] sm:$0xff]
  %v23 = vld [vmem:[%s1 + $0x40] sm:$0xff]
  %v24 = vld [vmem:[%s1 + $0x48] sm:$0xff]
  %v25 = vld [vmem:[%s1 + $0x50] sm:$0xff]
  %v26 = vld [vmem:[%s1 + $0x58] sm:$0xff]
  %v27 = vld [vmem:[%s1 + $0x60] sm:$0xff]
  %v28 = vld [vmem:[%s1 + $0x68] sm:$0xff]
  %v29 = vld [vmem:[%s1 + $0x70] sm:$0xff]
  %v30 = vld [vmem:[%s1 + $0x78] sm:$0xff]
  %v31 = vld [vmem:[%s1 + $0x80] sm:$0xff]
  %v32 = vld [vmem:[%s1 + $0x88] sm:$0xff]
  %v33 = vld [vmem:[%s1 + $0x90] sm:$0xff]
  %v34 = vld [vmem:[%s1 + $0x98] sm:$0xff]
  %v35 = vld [vmem:[%s1 + $0xa0] sm:$0xff]
  %v36 = vld [vmem:[%s1 + $0xa8] sm:$0xff]
  %v37 = vld [vmem:[%s1 + $0xb0] sm:$0xff]
  %v38 = vld [vmem:[%s1 + $0xb8] sm:$0xff]
  %v39 = vld [vmem:[%s1 + $0xc0] sm:$0xff]
  %v40 = vld [vmem:[%s1 + $0xc8] sm:$0xff]
  %v41 = vld [vmem:[%s1 + $0xd0] sm:$0xff]
  %v42 = vld [vmem:[%s1 + $0xd8] sm:$0xff]
  %v43 = vld [vmem:[%s1 + $0xe0] sm:$0xff]
  %v44 = vld [vmem:[%s1 + $0xe8] sm:$0xff]
  %v45 = vld [vmem:[%s1 + $0xf0] sm:$0xff]
  %v46 = vld [vmem:[%s1 + $0xf8] sm:$0xff]
  %v47 = vld [vmem:[%s2] sm:$0x3]
  %v49 = vlaneseq
  %v50 = vshrl.u32 %v49, 7
  %v51 = vsub.s32 0, %v50
  %v52 = vrot.slane %v47, %v51
  %v53 = vlaneseq
  %v54 = vshrl.u32 %v53, 7
  %v55 = vsub.s32 1, %v54
  %v56 = vrot.slane %v47, %v55
  %59 = vmatprep.subr.mxu0 %v16
  %60 = vmatpush1.msra.mxu0 %v15
  %61 = vmatprep.subr.mxu0 %v18
  %62 = vmatpush1.msra.mxu0 %v17
  %63 = vmatprep.subr.mxu0 %v20
  %64 = vmatpush1.msra.mxu0 %v19
  %65 = vmatprep.subr.mxu0 %v22
  %66 = vmatpush1.msra.mxu0 %v21
  %67 = vmatprep.subr.mxu0 %v24
  %68 = vmatpush1.msra.mxu0 %v23
  %69 = vmatprep.subr.mxu0 %v26
  %70 = vmatpush1.msra.mxu0 %v25
  %71 = vmatprep.subr.mxu0 %v28
  %72 = vmatpush1.msra.mxu0 %v27
  %73 = vmatprep.subr.mxu0 %v30
  %74 = vmatpush1.msra.mxu0 %v29
  %75 = vmatprep.subr.mxu0 %v32
  %76 = vmatpush1.msra.mxu0 %v31
  %77 = vmatprep.subr.mxu0 %v34
  %78 = vmatpush1.msra.mxu0 %v33
  %79 = vmatprep.subr.mxu0 %v36
  %80 = vmatpush1.msra.mxu0 %v35
  %81 = vmatprep.subr.mxu0 %v38
  %82 = vmatpush1.msra.mxu0 %v37
  %83 = vmatprep.subr.mxu0 %v40
  %84 = vmatpush1.msra.mxu0 %v39
  %85 = vmatprep.subr.mxu0 %v42
  %86 = vmatpush1.msra.mxu0 %v41
  %87 = vmatprep.subr.mxu0 %v44
  %88 = vmatpush1.msra.mxu0 %v43
  %89 = vmatprep.subr.mxu0 %v46
  %90 = vmatpush1.msra.mxu0 %v45
  %91 = vmatprep.subr.mxu0 0.0
  %92 = vmatpush1.msra.mxu0 0.0
  %93 = vmatprep.subr.mxu0 0.0
  %94 = vmatpush1.msra.mxu0 0.0
  %95 = vmatprep.subr.mxu0 0.0
  %96 = vmatpush1.msra.mxu0 0.0
  %97 = vmatprep.subr.mxu0 0.0
  %98 = vmatpush1.msra.mxu0 0.0
  %99 = vmatprep.subr.mxu0 0.0
  %100 = vmatpush1.msra.mxu0 0.0
  %101 = vmatprep.subr.mxu0 0.0
  %102 = vmatpush1.msra.mxu0 0.0
  %103 = vmatprep.subr.mxu0 0.0
  %104 = vmatpush1.msra.mxu0 0.0
  %105 = vmatprep.subr.mxu0 0.0
  %106 = vmatpush1.msra.mxu0 0.0
  %107 = vmatprep.subr.mxu0 0.0
  %108 = vmatpush1.msra.mxu0 0.0
  %109 = vmatprep.subr.mxu0 0.0
  %110 = vmatpush1.msra.mxu0 0.0
  %111 = vmatprep.subr.mxu0 0.0
  %112 = vmatpush1.msra.mxu0 0.0
  %113 = vmatprep.subr.mxu0 0.0
  %114 = vmatpush1.msra.mxu0 0.0
  %115 = vmatprep.subr.mxu0 0.0
  %116 = vmatpush1.msra.mxu0 0.0
  %117 = vmatprep.subr.mxu0 0.0
  %118 = vmatpush1.msra.mxu0 0.0
  %119 = vmatprep.subr.mxu0 0.0
  %120 = vmatpush1.msra.mxu0 0.0
  %121 = vmatprep.subr.mxu0 0.0
  %122 = vmatpush1.msra.mxu0 0.0
  %123 = vmatprep.mubr.f32.mxu0 0.0
  %124 = vmatmul.mubr.f32.gmra.mrb[0].mxu0 %v14
  %v125 = vpop.f32.mrb[0].mxu0
  %v126 = vadd.f32 %v52, %v125
  %v127 = vpop.f32.mrb[0].mxu0
  %v128 = vadd.f32 %v56, %v127
  %129 = vdwg.mxu0
  %v130 = vmax.f32 %v126, 0.0
  %v131 = vmax.f32 %v128, 0.0
  %v134 = vcombine.low %v130, %v131
  %v136 = vunpack.c.l.s4 1966171168
  %v137 = vunpack.c.0.s8 %v136
  %v138 = vlaneseq
  %v139 = vshrl.u32 %v138, 7
  %v140 = vsub.s32 %v137, %v139
  %v141 = vrot.slane %v134, %v140
  %v143 = vunpack.c.l.s4 1966171168
  %v144 = vunpack.c.0.s8 %v143
  %v145 = vlaneseq
  %v146 = vshrl.u32 %v145, 7
  %v147 = vsub.s32 %v144, %v146
  %v148 = vrot.slane %v141, %v147
  %v150 = vlaneseq
  %vm151 = vcmp.ge.s32.totalorder %v150, 0
  %vm152 = vcmp.lt.s32.totalorder %v150, 256
  %vm153 = vmand %vm151, %vm152
  %154 = vst.msk [vmem:[%s3] sm:$0x3] %vm153, %v148
  // Predicated region
  $region14: #{encoder_forward.1} parent=0 // pred_check
    _
  $region15: #{encoder_forward.1} parent=0 // pred_check_branch
    %156 = sbr.rel (0) target = $region17
  $region16: #{encoder_forward.1} parent=0 // pred_region
    _
  $region17: #{encoder_forward.1} parent=0 // pred_fallthru
    _
  // Predicated region
  $region18: #{encoder_forward.1} parent=0 // pred_check
    _
  $region19: #{encoder_forward.1} parent=0 // pred_check_branch
    %158 = sbr.rel (0) target = $region21
  $region20: #{encoder_forward.1} parent=0 // pred_region
    _
  $region21: #{encoder_forward.1} parent=0 // pred_fallthru
    _

</llo_original>
